<compile_context>
chip_gen: v7x
topology: tpu7x:2x2x1
jax: 0.10.0
libtpu: 0.0.40
codegen_flags: <defaults>
</compile_context>

<pallas_src>
import functools

import jax
import jax.numpy as jnp
from jax.experimental import pallas as pl
from jax.experimental.pallas import tpu as pltpu


# ----------------------------------------------------------------------------
# Pallas kernel: entire SGC forward in one invocation
# ----------------------------------------------------------------------------
def _sgc_forward_kernel(adj_ref, x_ref, w1_ref, b1_ref, wl_ref, bl_ref,
                        pmat_ref, out_ref, *, k_hops):
    adj = adj_ref[...]                                    # [N, N]     bf16
    h = x_ref[...]                                        # [N, Fpad]  bf16

    # K-hop propagation  h <- A_hat @ h   (bf16 MXU operands, f32 accumulation)
    for _ in range(k_hops):
        h = jnp.dot(adj, h,
                    preferred_element_type=jnp.float32).astype(jnp.bfloat16)

    # SGConv linear: [N, Fpad] @ [Fpad, H] + b1   (lane-dense, H = 128)
    x1 = jnp.dot(h, w1_ref[...],
                 preferred_element_type=jnp.float32) + b1_ref[...]

    # global_add_pool via one-hot matmul: [G, N] @ [N, H] -> [G, H] (lane-dense)
    y = jnp.dot(pmat_ref[...], x1, preferred_element_type=jnp.float32)

    # gather Linear(H, 1): broadcast multiply + lane reduce (no skinny matmul)
    out_ref[...] = jnp.sum(y * wl_ref[...], axis=-1, keepdims=True) + bl_ref[...]


# ----------------------------------------------------------------------------
# Wrapper
# ----------------------------------------------------------------------------
def sgc_forward(x, adj, batch, num_graphs, params, *, k_hops=2):
    n, f_in = x.shape
    hid = params["w1"].shape[1]

    # lane-pad the input feature dim to a multiple of 128 (zero cols in x,
    # zero rows in W1 -> exact)
    f_pad = ((f_in + 127) // 128) * 128
    xp = jnp.zeros((n, f_pad), jnp.float32).at[:, :f_in].set(x)
    w1p = jnp.zeros((f_pad, hid), jnp.float32).at[:f_in, :].set(params["w1"])

    # one-hot pooling matrix [G, N]
    pmat = (batch[None, :] == jnp.arange(num_graphs)[:, None]).astype(jnp.float32)

    # bf16 MXU operands (f32 accumulation inside the kernel)
    adj_b = adj.astype(jnp.bfloat16)
    xp_b = xp.astype(jnp.bfloat16)
    w1p_b = w1p.astype(jnp.bfloat16)
    b1 = params["b1"].reshape(1, hid).astype(jnp.float32)
    wl = params["wl"].reshape(1, hid).astype(jnp.float32)   # Linear(H,1) weight row
    bl = params["bl"].reshape(1, 1).astype(jnp.float32)

    operands = (adj_b, xp_b, w1p_b, b1, wl, bl, pmat)
    total_bytes = sum(int(a.size) * a.dtype.itemsize for a in operands)
    vmem_bytes = int(2 * total_bytes) + (4 << 20)            # generous headroom

    kernel = functools.partial(_sgc_forward_kernel, k_hops=k_hops)
    return pl.pallas_call(
        kernel,
        out_shape=jax.ShapeDtypeStruct((num_graphs, 1), jnp.float32),
        in_specs=[pl.BlockSpec(memory_space=pltpu.MemorySpace.VMEM)] * len(operands),
        out_specs=pl.BlockSpec(memory_space=pltpu.MemorySpace.VMEM),
        compiler_params=pltpu.CompilerParams(vmem_limit_bytes=vmem_bytes),
    )(*operands)


# ----------------------------------------------------------------------------
# Helpers + pure-JAX reference (mirrors the kernel's bf16/f32 numerics)
# ----------------------------------------------------------------------------
def gcn_normalized_adjacency(a):
    """gcn_norm with add_self_loops=True on a symmetric 0/1 adjacency."""
    a = a + jnp.eye(a.shape[0], dtype=a.dtype)
    deg = a.sum(axis=1)
    dinv = jnp.where(deg > 0, 1.0 / jnp.sqrt(jnp.maximum(deg, 1e-12)), 0.0)
    return a * dinv[:, None] * dinv[None, :]


def glorot(key, shape):
    fan_in, fan_out = shape[-2], shape[-1]
    lim = jnp.sqrt(6.0 / (fan_in + fan_out))
    return jax.random.uniform(key, shape, jnp.float32, -lim, lim)


def sgc_reference(x, adj, batch, num_graphs, params, *, k_hops=2):
    bf = lambda v: v.astype(jnp.bfloat16).astype(jnp.float32)
    adj_b = bf(adj)
    h = bf(x)
    for _ in range(k_hops):
        h = bf(adj_b @ h)                       # kernel re-feeds bf16 each hop
    x1 = h @ bf(params["w1"]) + params["b1"][None, :]
    pmat = (batch[None, :] == jnp.arange(num_graphs)[:, None]).astype(jnp.float32)
    y = pmat @ x1
    return y @ params["wl"].reshape(1, -1).T + params["bl"].reshape(1, 1)


# ----------------------------------------------------------------------------
# Demo
# ----------------------------------------------------------------------------
if __name__ == "__main__":
    N, G = 32, 2               # nodes, graphs
    F_IN, HID, K = 75, 128, 2  # SGConv(75, 128, K=2) + Linear(128, 1)

    key = jax.random.PRNGKey(0)
    k_x, k_a, k_w1, k_wl = jax.random.split(key, 4)

    # synthetic node features / block-diagonal graph structure
    x = jax.random.normal(k_x, (N, F_IN), jnp.float32)
    batch = jnp.repeat(jnp.arange(G, dtype=jnp.int32), N // G)
    a = jax.random.bernoulli(k_a, 0.3, (N, N))
    a = jnp.logical_or(a, a.T) & (~jnp.eye(N, dtype=bool))
    a = a & (batch[:, None] == batch[None, :])
    adj = gcn_normalized_adjacency(a.astype(jnp.float32))

    params = {
        "w1": glorot(k_w1, (F_IN, HID)),            # SGConv lin weight (in, out)
        "b1": jnp.zeros((HID,), jnp.float32),       # SGConv lin bias
        "wl": glorot(k_wl, (1, HID)),               # gather_layer weight [out, in]
        "bl": jnp.zeros((1,), jnp.float32),         # gather_layer bias
    }

    z = sgc_forward(x, adj, batch, G, params, k_hops=K)
    z = jax.block_until_ready(z)

    z_ref = sgc_reference(x, adj, batch, G, params, k_hops=K)
    assert z.shape == (G, 1)
    assert jnp.all(jnp.isfinite(z))
    assert jnp.allclose(z, z_ref, rtol=2e-2, atol=2e-2), (z, z_ref)
    print("KERNEL_OK")
</pallas_src>

<mosaic_0001>
module attributes {stable_mosaic.version = 11 : i64} {
  func.func @_sgc_forward_kernel(%arg0: memref<32x32xbf16, #tpu.memory_space<vmem>>, %arg1: memref<32x128xbf16, #tpu.memory_space<vmem>>, %arg2: memref<128x128xbf16, #tpu.memory_space<vmem>>, %arg3: memref<1x128xf32, #tpu.memory_space<vmem>>, %arg4: memref<1x128xf32, #tpu.memory_space<vmem>>, %arg5: memref<1x1xf32, #tpu.memory_space<vmem>>, %arg6: memref<2x32xf32, #tpu.memory_space<vmem>>, %arg7: memref<2x1xf32, #tpu.memory_space<vmem>>) attributes {dimension_semantics = [], scalar_prefetch = 0 : i64, scratch_operands = 0 : i64, tpu.core_type = #tpu.core_type<tc>} {
    %c0 = arith.constant 0 : index
    %c0_0 = arith.constant 0 : index
    %0 = vector.load %arg0[%c0, %c0_0] : memref<32x32xbf16, #tpu.memory_space<vmem>>, vector<32x32xbf16>
    %c0_1 = arith.constant 0 : index
    %c0_2 = arith.constant 0 : index
    %1 = vector.load %arg1[%c0_1, %c0_2] : memref<32x128xbf16, #tpu.memory_space<vmem>>, vector<32x128xbf16>
    %cst = arith.constant dense<0.000000e+00> : vector<32x128xf32>
    %2 = tpu.matmul %0, %1, %cst {dimension_numbers = #tpu.dot_dimension_numbers<[1], [0], [0], [1], [0, 0, 1, 1], [], []>} : vector<32x32xbf16>, vector<32x128xbf16>, vector<32x128xf32> -> vector<32x128xf32>
    %3 = arith.truncf %2 : vector<32x128xf32> to vector<32x128xbf16>
    %cst_3 = arith.constant dense<0.000000e+00> : vector<32x128xf32>
    %4 = tpu.matmul %0, %3, %cst_3 {dimension_numbers = #tpu.dot_dimension_numbers<[1], [0], [0], [1], [0, 0, 1, 1], [], []>} : vector<32x32xbf16>, vector<32x128xbf16>, vector<32x128xf32> -> vector<32x128xf32>
    %5 = arith.truncf %4 : vector<32x128xf32> to vector<32x128xbf16>
    %c0_4 = arith.constant 0 : index
    %c0_5 = arith.constant 0 : index
    %6 = vector.load %arg2[%c0_4, %c0_5] : memref<128x128xbf16, #tpu.memory_space<vmem>>, vector<128x128xbf16>
    %cst_6 = arith.constant dense<0.000000e+00> : vector<32x128xf32>
    %7 = tpu.matmul %5, %6, %cst_6 {dimension_numbers = #tpu.dot_dimension_numbers<[1], [0], [0], [1], [0, 0, 1, 1], [], []>} : vector<32x128xbf16>, vector<128x128xbf16>, vector<32x128xf32> -> vector<32x128xf32>
    %c0_7 = arith.constant 0 : index
    %c0_8 = arith.constant 0 : index
    %8 = vector.load %arg3[%c0_7, %c0_8] : memref<1x128xf32, #tpu.memory_space<vmem>>, vector<1x128xf32>
    %9 = vector.broadcast %8 : vector<1x128xf32> to vector<32x128xf32>
    %10 = arith.addf %7, %9 : vector<32x128xf32>
    %c0_9 = arith.constant 0 : index
    %c0_10 = arith.constant 0 : index
    %11 = vector.load %arg6[%c0_9, %c0_10] : memref<2x32xf32, #tpu.memory_space<vmem>>, vector<2x32xf32>
    %cst_11 = arith.constant dense<0.000000e+00> : vector<2x128xf32>
    %12 = tpu.matmul %11, %10, %cst_11 {dimension_numbers = #tpu.dot_dimension_numbers<[1], [0], [0], [1], [0, 0, 1, 1], [], []>} : vector<2x32xf32>, vector<32x128xf32>, vector<2x128xf32> -> vector<2x128xf32>
    %c0_12 = arith.constant 0 : index
    %c0_13 = arith.constant 0 : index
    %13 = vector.load %arg4[%c0_12, %c0_13] : memref<1x128xf32, #tpu.memory_space<vmem>>, vector<1x128xf32>
    %14 = vector.broadcast %13 : vector<1x128xf32> to vector<2x128xf32>
    %15 = arith.mulf %12, %14 : vector<2x128xf32>
    %cst_14 = arith.constant dense<0.000000e+00> : vector<2xf32>
    %16 = vector.multi_reduction <add>, %15, %cst_14 [1] : vector<2x128xf32> to vector<2xf32>
    %17 = vector.shape_cast %16 : vector<2xf32> to vector<2x1xf32>
    %c0_15 = arith.constant 0 : index
    %c0_16 = arith.constant 0 : index
    %18 = vector.load %arg5[%c0_15, %c0_16] : memref<1x1xf32, #tpu.memory_space<vmem>>, vector<1x1xf32>
    %19 = vector.broadcast %18 : vector<1x1xf32> to vector<2x1xf32>
    %20 = arith.addf %17, %19 : vector<2x1xf32>
    %c0_17 = arith.constant 0 : index
    %c0_18 = arith.constant 0 : index
    %21 = vector.load %arg7[%c0_17, %c0_18] : memref<2x1xf32, #tpu.memory_space<vmem>>, vector<2x1xf32>
    tpu.vector_store %arg7[%c0_17, %c0_18], %20 {strides = array<i32>} : memref<2x1xf32, #tpu.memory_space<vmem>>, vector<2x1xf32>,
    return
  }
}

</mosaic_0001>

<llo_original>
// kernel: tpu_custom_call.1
$region0: #{tpu_custom_call.1}
  #allocation0 [shape = 'u32[]', space=smem, size = 0x4, offset = 0x4, fixed_abs, tag = 'smem constant byte address 0x4 - core index']
  #allocation1 [shape = 'u32[144,128]{1,0:T(1,128)}', space=vmem, size = 0x12000, scoped, tag = 'internal scratch']
  #allocation2 [shape = 'f32[1,1]{1,0:T(1,128)S(1)}', space=vmem, size = 0x200, scoped, tag = 'scoped memory for tpu_custom_call.1']
  %s0 = inlined_call_operand.hbm [shape: bf16[32,32], index: 0, kind: input, shape index: {}]
  %s1 = inlined_call_operand.hbm [shape: bf16[32,128], index: 1, kind: input, shape index: {}]
  %s2 = inlined_call_operand.hbm [shape: bf16[128,128], index: 2, kind: input, shape index: {}]
  %s3 = inlined_call_operand.vmem [shape: f32[1,128], index: 3, kind: input, shape index: {}]
  %s4 = inlined_call_operand.vmem [shape: f32[1,128], index: 4, kind: input, shape index: {}]
  %s5 = inlined_call_operand.<no memory space> [shape: f32[1,1], index: 5, kind: input, shape index: {}]
  %s6 = inlined_call_operand.vmem [shape: f32[2,32], index: 6, kind: input, shape index: {}]
  %s7 = inlined_call_operand.vmem [shape: f32[2,1], index: 7, kind: output, shape index: {}]
  %s8 = sld [smem:[#allocation0]]
  $region50: #{tpu_custom_call.1} parent=0
    _
  %s10 = ssub.s32 1, %s8
  %s11 = scalar_select 0, %s10, %s8
  %v12 = vstv %s5
  %13 = vst [vmem:[#allocation2] sm:$0x1] %v12
  $region1: #{tpu_custom_call.1} parent=0
    #allocation3 [shape = 'u8[8192]{0}', space=vmem, size = 0x2000, scoped, tag = 'input window, operand 0, single buffered']
    #allocation4 [shape = 's32[1]{0}', space=sflag, size = 0x4, scoped, tag = 'scoped memory for tpu_custom_call.1']
    #allocation5 [shape = 'u8[8192]{0}', space=vmem, size = 0x2000, scoped, tag = 'input window, operand 1, single buffered']
    #allocation6 [shape = 's32[1]{0}', space=sflag, size = 0x4, scoped, tag = 'scoped memory for tpu_custom_call.1']
    #allocation7 [shape = 'u8[32768]{0}', space=vmem, size = 0x8000, scoped, tag = 'input window, operand 2, single buffered']
    %14 = vsyncpa [#allocation4], 0
    %15 = vsyncpa [#allocation6], 0
    // Predicated region
    $region2: #{tpu_custom_call.1} parent=1 // pred_check
      _
    $region3: #{tpu_custom_call.1} parent=1 // pred_check_branch
      %17 = sbr.rel (0) target = $region5
    $region4: #{tpu_custom_call.1} parent=1 // pred_region
      %s19 = ssub.s32 256, 256
      %20 = vsyncadd [#allocation4], %s19
      %s21 = sshll.u32 [#allocation3], 4
      %s22 = int_to_ptr.vmem [resolvable:$true] %s21
      %27 = dma.hbm_to_vmem [thread:$0]  %s0, 256, %s22, [#allocation4], 64, 64, 4
    $region5: #{tpu_custom_call.1} parent=1 // pred_fallthru
      _
    // Predicated region
    $region6: #{tpu_custom_call.1} parent=1 // pred_check
      _
    $region7: #{tpu_custom_call.1} parent=1 // pred_check_branch
      %29 = sbr.rel (0) target = $region9
    $region8: #{tpu_custom_call.1} parent=1 // pred_region
      %s31 = ssub.s32 256, 256
      %32 = vsyncadd [#allocation6], %s31
      %s33 = sshll.u32 [#allocation5], 4
      %s34 = int_to_ptr.vmem [resolvable:$true] %s33
      %39 = dma.hbm_to_vmem [thread:$0]  %s1, 256, %s34, [#allocation6], 64, 64, 4
    $region9: #{tpu_custom_call.1} parent=1 // pred_fallthru
      _
    // Predicated region
    $region10: #{tpu_custom_call.1} parent=1 // pred_check
      _
    $region11: #{tpu_custom_call.1} parent=1 // pred_check_branch
      %41 = sbr.rel (0) target = $region13
    $region12: #{tpu_custom_call.1} parent=1 // pred_region
      %s43 = ssub.s32 1024, 1024
      %44 = vsyncadd [#allocation6], %s43
      %s45 = sshll.u32 [#allocation7], 4
      %s46 = int_to_ptr.vmem [resolvable:$true] %s45
      %51 = dma.hbm_to_vmem [thread:$0]  %s2, 1024, %s46, [#allocation6], 64, 64, 4
    $region13: #{tpu_custom_call.1} parent=1 // pred_fallthru
      _
    // Predicated region
    $region14: #{tpu_custom_call.1} parent=1 // pred_check
      _
    $region15: #{tpu_custom_call.1} parent=1 // pred_check_branch
      %53 = sbr.rel (0) target = $region17
    $region16: #{tpu_custom_call.1} parent=1 // pred_region
      _
    $region17: #{tpu_custom_call.1} parent=1 // pred_fallthru
      _
    // Predicated region
    $region18: #{tpu_custom_call.1} parent=1 // pred_check
      _
    $region19: #{tpu_custom_call.1} parent=1 // pred_check_branch
      %55 = sbr.rel (0) target = $region21
    $region20: #{tpu_custom_call.1} parent=1 // pred_region
      _
    $region21: #{tpu_custom_call.1} parent=1 // pred_fallthru
      _
    // Predicated region
    $region22: #{tpu_custom_call.1} parent=1 // pred_check
      _
    $region23: #{tpu_custom_call.1} parent=1 // pred_check_branch
      %57 = sbr.rel (0) target = $region25
    $region24: #{tpu_custom_call.1} parent=1 // pred_region
      _
    $region25: #{tpu_custom_call.1} parent=1 // pred_fallthru
      _
    // Predicated region
    $region26: #{tpu_custom_call.1} parent=1 // pred_check
      _
    $region27: #{tpu_custom_call.1} parent=1 // pred_check_branch
      %59 = sbr.rel (0) target = $region29
    $region28: #{tpu_custom_call.1} parent=1 // pred_region
      _
    $region29: #{tpu_custom_call.1} parent=1 // pred_fallthru
      _
    // Predicated region
    $region30: #{tpu_custom_call.1} parent=1 // pred_check
      _
    $region31: #{tpu_custom_call.1} parent=1 // pred_check_branch
      %61 = sbr.rel (0) target = $region33
    $region32: #{tpu_custom_call.1} parent=1 // pred_region
      %62 = dma.done [#allocation4], 256
    $region33: #{tpu_custom_call.1} parent=1 // pred_fallthru
      _
    // Predicated region
    $region34: #{tpu_custom_call.1} parent=1 // pred_check
      _
    $region35: #{tpu_custom_call.1} parent=1 // pred_check_branch
      %64 = sbr.rel (0) target = $region37
    $region36: #{tpu_custom_call.1} parent=1 // pred_region
      %65 = dma.done [#allocation6], 256
    $region37: #{tpu_custom_call.1} parent=1 // pred_fallthru
      _
    // Predicated region
    $region38: #{tpu_custom_call.1} parent=1 // pred_check
      _
    $region39: #{tpu_custom_call.1} parent=1 // pred_check_branch
      %67 = sbr.rel (0) target = $region41
    $region40: #{tpu_custom_call.1} parent=1 // pred_region
      %68 = dma.done [#allocation6], 1024
    $region41: #{tpu_custom_call.1} parent=1 // pred_fallthru
      _
    %v70 = vld [vmem:[#allocation3] sm:$0xf]
    %v71 = vld [vmem:[#allocation3 + $0x4] sm:$0xf]
    %v72 = vld [vmem:[#allocation3 + $0x8] sm:$0xf]
    %v73 = vld [vmem:[#allocation3 + $0xc] sm:$0xf]
    %v74 = vld [vmem:[#allocation5] sm:$0xf]
    %v75 = vld [vmem:[#allocation5 + $0x4] sm:$0xf]
    %v76 = vld [vmem:[#allocation5 + $0x8] sm:$0xf]
    %v77 = vld [vmem:[#allocation5 + $0xc] sm:$0xf]
    %v82 = vunpack.c.l.b16 %v70
    %v83 = vunpack.c.l.b16 %v71
    %v84 = vunpack.c.l.b16 %v72
    %v85 = vunpack.c.l.b16 %v73
    %v86 = vpack.c.b16 %v83, %v82
    %v87 = vpack.c.b16 %v85, %v84
    %v92 = vunpack.c.l.b16 %v74
    %v93 = vunpack.c.l.b16 %v75
    %v94 = vunpack.c.l.b16 %v76
    %v95 = vunpack.c.l.b16 %v77
    %v96 = vpack.c.b16 %v93, %v92
    %v97 = vpack.c.b16 %v95, %v94
    %vm100 = vcmask 261120
    %v102 = vsel %vm100, %v86, 0
    %v105 = vsel %vm100, %v87, 0
    %107 = vmatprep.subr.bf16.mxu0 0
    %108 = vmatpush1.bf16.msra.mxu0 %v96
    %109 = vmatprep.subr.bf16.mxu0 0
    %110 = vmatpush1.bf16.msra.mxu0 %v97
    %111 = vmatprep.subr.bf16.mxu0 0
    %112 = vmatpush1.bf16.msra.mxu0 0
    %113 = vmatprep.subr.bf16.mxu0 0
    %114 = vmatpush1.bf16.msra.mxu0 0
    %115 = vmatprep.subr.bf16.mxu0 0
    %116 = vmatpush1.bf16.msra.mxu0 0
    %117 = vmatprep.subr.bf16.mxu0 0
    %118 = vmatpush1.bf16.msra.mxu0 0
    %119 = vmatprep.subr.bf16.mxu0 0
    %120 = vmatpush1.bf16.msra.mxu0 0
    %121 = vmatprep.subr.bf16.mxu0 0
    %122 = vmatpush1.bf16.msra.mxu0 0
    %123 = vmatprep.subr.bf16.mxu0 0
    %124 = vmatpush1.bf16.msra.mxu0 0
    %125 = vmatprep.subr.bf16.mxu0 0
    %126 = vmatpush1.bf16.msra.mxu0 0
    %127 = vmatprep.subr.bf16.mxu0 0
    %128 = vmatpush1.bf16.msra.mxu0 0
    %129 = vmatprep.subr.bf16.mxu0 0
    %130 = vmatpush1.bf16.msra.mxu0 0
    %131 = vmatprep.subr.bf16.mxu0 0
    %132 = vmatpush1.bf16.msra.mxu0 0
    %133 = vmatprep.subr.bf16.mxu0 0
    %134 = vmatpush1.bf16.msra.mxu0 0
    %135 = vmatprep.subr.bf16.mxu0 0
    %136 = vmatpush1.bf16.msra.mxu0 0
    %137 = vmatprep.subr.bf16.mxu0 0
    %138 = vmatpush1.bf16.msra.mxu0 0
    %139 = vmatprep.mubr.bf16.mxu0 0
    %140 = vmatmul.mubr.bf16.gmra.mrb[0].mxu0 %v102
    %v141 = vpop.f32.mrb[0].mxu0
    %v142 = vadd.f32 0.0, %v141
    %v143 = vpop.f32.mrb[0].mxu0
    %v144 = vpop.f32.mrb[0].mxu0
    %v145 = vadd.f32 0.0, %v144
    %v146 = vpop.f32.mrb[0].mxu0
    %147 = vmatprep.mubr.bf16.mxu0 0
    %148 = vmatmul.mubr.bf16.gmra.mrb[0].mxu0 %v105
    %v149 = vpop.f32.mrb[0].mxu0
    %v150 = vadd.f32 0.0, %v149
    %v151 = vpop.f32.mrb[0].mxu0
    %v152 = vpop.f32.mrb[0].mxu0
    %v153 = vadd.f32 0.0, %v152
    %v154 = vpop.f32.mrb[0].mxu0
    %155 = vdwg.mxu0
    %v156 = vpack.c.bf16 %v145, %v142
    %v157 = vpack.c.bf16 %v153, %v150
    %158 = vmatprep.subr.bf16.mxu0 0
    %159 = vmatpush1.bf16.msra.mxu0 %v156
    %160 = vmatprep.subr.bf16.mxu0 0
    %161 = vmatpush1.bf16.msra.mxu0 %v157
    %162 = vmatprep.subr.bf16.mxu0 0
    %163 = vmatpush1.bf16.msra.mxu0 0
    %164 = vmatprep.subr.bf16.mxu0 0
    %165 = vmatpush1.bf16.msra.mxu0 0
    %166 = vmatprep.subr.bf16.mxu0 0
    %167 = vmatpush1.bf16.msra.mxu0 0
    %168 = vmatprep.subr.bf16.mxu0 0
    %169 = vmatpush1.bf16.msra.mxu0 0
    %170 = vmatprep.subr.bf16.mxu0 0
    %171 = vmatpush1.bf16.msra.mxu0 0
    %172 = vmatprep.subr.bf16.mxu0 0
    %173 = vmatpush1.bf16.msra.mxu0 0
    %174 = vmatprep.subr.bf16.mxu0 0
    %175 = vmatpush1.bf16.msra.mxu0 0
    %176 = vmatprep.subr.bf16.mxu0 0
    %177 = vmatpush1.bf16.msra.mxu0 0
    %178 = vmatprep.subr.bf16.mxu0 0
    %179 = vmatpush1.bf16.msra.mxu0 0
    %180 = vmatprep.subr.bf16.mxu0 0
    %181 = vmatpush1.bf16.msra.mxu0 0
    %182 = vmatprep.subr.bf16.mxu0 0
    %183 = vmatpush1.bf16.msra.mxu0 0
    %184 = vmatprep.subr.bf16.mxu0 0
    %185 = vmatpush1.bf16.msra.mxu0 0
    %186 = vmatprep.subr.bf16.mxu0 0
    %187 = vmatpush1.bf16.msra.mxu0 0
    %188 = vmatprep.subr.bf16.mxu0 0
    %189 = vmatpush1.bf16.msra.mxu0 0
    %190 = vmatprep.mubr.bf16.mxu0 0
    %191 = vmatmul.mubr.bf16.gmra.mrb[0].mxu0 %v102
    %v192 = vpop.f32.mrb[0].mxu0
    %v193 = vadd.f32 0.0, %v192
    %v194 = vpop.f32.mrb[0].mxu0
    %v195 = vpop.f32.mrb[0].mxu0
    %v196 = vadd.f32 0.0, %v195
    %v197 = vpop.f32.mrb[0].mxu0
    %198 = vmatprep.mubr.bf16.mxu0 0
    %199 = vmatmul.mubr.bf16.gmra.mrb[0].mxu0 %v105
    %v200 = vpop.f32.mrb[0].mxu0
    %v201 = vadd.f32 0.0, %v200
    %v202 = vpop.f32.mrb[0].mxu0
    %v203 = vpop.f32.mrb[0].mxu0
    %v204 = vadd.f32 0.0, %v203
    %v205 = vpop.f32.mrb[0].mxu0
    %206 = vdwg.mxu0
    %v207 = vpack.c.bf16 %v196, %v193
    %v208 = vpack.c.bf16 %v204, %v201
    %v209 = vld [vmem:[#allocation7] sm:$0xf]
    %v210 = vld [vmem:[#allocation7 + $0x4] sm:$0xf]
    %v211 = vld [vmem:[#allocation7 + $0x8] sm:$0xf]
    %v212 = vld [vmem:[#allocation7 + $0xc] sm:$0xf]
    %v213 = vld [vmem:[#allocation7 + $0x10] sm:$0xf]
    %v214 = vld [vmem:[#allocation7 + $0x14] sm:$0xf]
    %v215 = vld [vmem:[#allocation7 + $0x18] sm:$0xf]
    %v216 = vld [vmem:[#allocation7 + $0x1c] sm:$0xf]
    %v217 = vld [vmem:[#allocation7 + $0x20] sm:$0xf]
    %v218 = vld [vmem:[#allocation7 + $0x24] sm:$0xf]
    %v219 = vld [vmem:[#allocation7 + $0x28] sm:$0xf]
    %v220 = vld [vmem:[#allocation7 + $0x2c] sm:$0xf]
    %v221 = vld [vmem:[#allocation7 + $0x30] sm:$0xf]
    %v222 = vld [vmem:[#allocation7 + $0x34] sm:$0xf]
    %v223 = vld [vmem:[#allocation7 + $0x38] sm:$0xf]
    %v224 = vld [vmem:[#allocation7 + $0x3c] sm:$0xf]
    %v225 = vld [vmem:[%s3] sm:$0x1]
    %v227 = vlaneseq
    %v228 = vshrl.u32 %v227, 7
    %v229 = vsub.s32 0, %v228
    %v230 = vrot.slane %v225, %v229
    %v248 = vunpack.c.l.b16 %v209
    %v249 = vunpack.c.l.b16 %v210
    %v250 = vunpack.c.l.b16 %v211
    %v251 = vunpack.c.l.b16 %v212
    %v252 = vunpack.c.l.b16 %v213
    %v253 = vunpack.c.l.b16 %v214
    %v254 = vunpack.c.l.b16 %v215
    %v255 = vunpack.c.l.b16 %v216
    %v256 = vunpack.c.l.b16 %v217
    %v257 = vunpack.c.l.b16 %v218
    %v258 = vunpack.c.l.b16 %v219
    %v259 = vunpack.c.l.b16 %v220
    %v260 = vunpack.c.l.b16 %v221
    %v261 = vunpack.c.l.b16 %v222
    %v262 = vunpack.c.l.b16 %v223
    %v263 = vunpack.c.l.b16 %v224
    %v264 = vpack.c.b16 %v249, %v248
    %v265 = vpack.c.b16 %v251, %v250
    %v266 = vpack.c.b16 %v253, %v252
    %v267 = vpack.c.b16 %v255, %v254
    %v268 = vpack.c.b16 %v257, %v256
    %v269 = vpack.c.b16 %v259, %v258
    %v270 = vpack.c.b16 %v261, %v260
    %v271 = vpack.c.b16 %v263, %v262
    %280 = vmatprep.subr.bf16.mxu0 0
    %281 = vmatpush1.bf16.msra.mxu0 %v264
    %282 = vmatprep.subr.bf16.mxu0 0
    %283 = vmatpush1.bf16.msra.mxu0 %v265
    %284 = vmatprep.subr.bf16.mxu0 0
    %285 = vmatpush1.bf16.msra.mxu0 %v266
    %286 = vmatprep.subr.bf16.mxu0 0
    %287 = vmatpush1.bf16.msra.mxu0 %v267
    %288 = vmatprep.subr.bf16.mxu0 0
    %289 = vmatpush1.bf16.msra.mxu0 %v268
    %290 = vmatprep.subr.bf16.mxu0 0
    %291 = vmatpush1.bf16.msra.mxu0 %v269
    %292 = vmatprep.subr.bf16.mxu0 0
    %293 = vmatpush1.bf16.msra.mxu0 %v270
    %294 = vmatprep.subr.bf16.mxu0 0
    %295 = vmatpush1.bf16.msra.mxu0 %v271
    %296 = vmatprep.subr.bf16.mxu0 0
    %297 = vmatpush1.bf16.msra.mxu0 0
    %298 = vmatprep.subr.bf16.mxu0 0
    %299 = vmatpush1.bf16.msra.mxu0 0
    %300 = vmatprep.subr.bf16.mxu0 0
    %301 = vmatpush1.bf16.msra.mxu0 0
    %302 = vmatprep.subr.bf16.mxu0 0
    %303 = vmatpush1.bf16.msra.mxu0 0
    %304 = vmatprep.subr.bf16.mxu0 0
    %305 = vmatpush1.bf16.msra.mxu0 0
    %306 = vmatprep.subr.bf16.mxu0 0
    %307 = vmatpush1.bf16.msra.mxu0 0
    %308 = vmatprep.subr.bf16.mxu0 0
    %309 = vmatpush1.bf16.msra.mxu0 0
    %310 = vmatprep.subr.bf16.mxu0 0
    %311 = vmatpush1.bf16.msra.mxu0 0
    %312 = vmatprep.mubr.bf16.mxu0 0
    %313 = vmatmul.mubr.bf16.gmra.mrb[0].mxu0 %v207
    %v314 = vpop.f32.mrb[0].mxu0
    %v315 = vadd.f32 %v230, %v314
    %v316 = vpop.f32.mrb[0].mxu0
    %v317 = vpop.f32.mrb[0].mxu0
    %v318 = vadd.f32 %v230, %v317
    %v319 = vpop.f32.mrb[0].mxu0
    %320 = vmatprep.mubr.bf16.mxu0 0
    %321 = vmatmul.mubr.bf16.gmra.mrb[0].mxu0 %v208
    %v322 = vpop.f32.mrb[0].mxu0
    %v323 = vadd.f32 %v230, %v322
    %v324 = vpop.f32.mrb[0].mxu0
    %v325 = vpop.f32.mrb[0].mxu0
    %v326 = vadd.f32 %v230, %v325
    %v327 = vpop.f32.mrb[0].mxu0
    %328 = vdwg.mxu0
    %v329 = vld [vmem:[%s6] sm:$0x3]
    %v331 = vsel %vm100, %v329, 0
    %333 = vmatprep.subr.mxu0 0.0
    %334 = vmatpush1.msra.mxu0 %v315
    %335 = vmatprep.subr.mxu0 0.0
    %336 = vmatpush1.msra.mxu0 %v318
    %337 = vmatprep.subr.mxu0 0.0
    %338 = vmatpush1.msra.mxu0 %v323
    %339 = vmatprep.subr.mxu0 0.0
    %340 = vmatpush1.msra.mxu0 %v326
    %341 = vmatprep.subr.mxu0 0.0
    %342 = vmatpush1.msra.mxu0 0.0
    %343 = vmatprep.subr.mxu0 0.0
    %344 = vmatpush1.msra.mxu0 0.0
    %345 = vmatprep.subr.mxu0 0.0
    %346 = vmatpush1.msra.mxu0 0.0
    %347 = vmatprep.subr.mxu0 0.0
    %348 = vmatpush1.msra.mxu0 0.0
    %349 = vmatprep.subr.mxu0 0.0
    %350 = vmatpush1.msra.mxu0 0.0
    %351 = vmatprep.subr.mxu0 0.0
    %352 = vmatpush1.msra.mxu0 0.0
    %353 = vmatprep.subr.mxu0 0.0
    %354 = vmatpush1.msra.mxu0 0.0
    %355 = vmatprep.subr.mxu0 0.0
    %356 = vmatpush1.msra.mxu0 0.0
    %357 = vmatprep.subr.mxu0 0.0
    %358 = vmatpush1.msra.mxu0 0.0
    %359 = vmatprep.subr.mxu0 0.0
    %360 = vmatpush1.msra.mxu0 0.0
    %361 = vmatprep.subr.mxu0 0.0
    %362 = vmatpush1.msra.mxu0 0.0
    %363 = vmatprep.subr.mxu0 0.0
    %364 = vmatpush1.msra.mxu0 0.0
    %365 = vmatprep.subr.mxu0 0.0
    %366 = vmatpush1.msra.mxu0 0.0
    %367 = vmatprep.subr.mxu0 0.0
    %368 = vmatpush1.msra.mxu0 0.0
    %369 = vmatprep.subr.mxu0 0.0
    %370 = vmatpush1.msra.mxu0 0.0
    %371 = vmatprep.subr.mxu0 0.0
    %372 = vmatpush1.msra.mxu0 0.0
    %373 = vmatprep.subr.mxu0 0.0
    %374 = vmatpush1.msra.mxu0 0.0
    %375 = vmatprep.subr.mxu0 0.0
    %376 = vmatpush1.msra.mxu0 0.0
    %377 = vmatprep.subr.mxu0 0.0
    %378 = vmatpush1.msra.mxu0 0.0
    %379 = vmatprep.subr.mxu0 0.0
    %380 = vmatpush1.msra.mxu0 0.0
    %381 = vmatprep.subr.mxu0 0.0
    %382 = vmatpush1.msra.mxu0 0.0
    %383 = vmatprep.subr.mxu0 0.0
    %384 = vmatpush1.msra.mxu0 0.0
    %385 = vmatprep.subr.mxu0 0.0
    %386 = vmatpush1.msra.mxu0 0.0
    %387 = vmatprep.subr.mxu0 0.0
    %388 = vmatpush1.msra.mxu0 0.0
    %389 = vmatprep.subr.mxu0 0.0
    %390 = vmatpush1.msra.mxu0 0.0
    %391 = vmatprep.subr.mxu0 0.0
    %392 = vmatpush1.msra.mxu0 0.0
    %393 = vmatprep.subr.mxu0 0.0
    %394 = vmatpush1.msra.mxu0 0.0
    %395 = vmatprep.subr.mxu0 0.0
    %396 = vmatpush1.msra.mxu0 0.0
    %397 = vmatprep.mubr.f32.mxu0 0.0
    %398 = vmatmul.mubr.f32.gmra.mrb[0].mxu0 %v331
    %v399 = vpop.f32.mrb[0].mxu0
    %v400 = vadd.f32 0.0, %v399
    %v401 = vpop.f32.mrb[0].mxu0
    %402 = vdwg.mxu0
    %v403 = vld [vmem:[%s4] sm:$0x1]
    %v405 = vlaneseq
    %v406 = vshrl.u32 %v405, 7
    %v407 = vsub.s32 0, %v406
    %v408 = vrot.slane %v403, %v407
    %v410 = vmul.f32 %v400, %v408
    %vm411 = vcmask 1041408
    %v412 = vsel %vm411, %v410, 0.0
    %413 = vadd.xlane.f32.xlu0 %v412
    %v414 = vpop.xlane.xlu0 %413
    %v415 = vld [vmem:[#allocation2] sm:$0x1]
    %v417 = vlaneseq
    %v418 = vshrl.u32 %v417, 7
    %v419 = vsub.s32 0, %v418
    %v420 = vrot.slane %v415, %v419
    %v422 = vadd.f32 %v414, %v420
    %vm423 = vcmask 1024
    %424 = vst.msk [vmem:[%s7] sm:$0x3] %vm423, %v422
    // Predicated region
    $region42: #{tpu_custom_call.1} parent=1 // pred_check
      _
    $region43: #{tpu_custom_call.1} parent=1 // pred_check_branch
      %426 = sbr.rel (0) target = $region45
    $region44: #{tpu_custom_call.1} parent=1 // pred_region
      _
    $region45: #{tpu_custom_call.1} parent=1 // pred_fallthru
      _
    // Predicated region
    $region46: #{tpu_custom_call.1} parent=1 // pred_check
      _
    $region47: #{tpu_custom_call.1} parent=1 // pred_check_branch
      %428 = sbr.rel (0) target = $region49
    $region48: #{tpu_custom_call.1} parent=1 // pred_region
      _
    $region49: #{tpu_custom_call.1} parent=1 // pred_fallthru
      _
    %429 = vsyncpa [#allocation4], 1
    %430 = vsyncpa [#allocation6], 1

</llo_original>
